<compile_context>
chip_gen: v6e
topology: v6e:2x2x1
jax: 0.10.0
libtpu: 0.0.40
codegen_flags: <defaults>
</compile_context>

<pallas_src>
import functools
import math

import jax
import jax.numpy as jnp
from jax.experimental import pallas as pl
from jax.experimental.pallas import tpu as pltpu


def _round_up(x, m):
    return ((x + m - 1) // m) * m


# --------------------------- VMEM budget helpers -----------------------------
@functools.lru_cache(maxsize=None)
def _vmem_capacity_bytes():
    """Physical VMEM per core (128 MiB v5e/v6e, 64 MiB v7x). Conservative
    64 MiB fallback if the query is unavailable."""
    try:
        cap = int(getattr(pltpu.get_tpu_info(), "vmem_capacity_bytes", 0) or 0)
        if cap > 0:
            return cap
    except Exception:
        pass
    return 64 << 20


def _vmem_budget_bytes():
    # Usable tile budget: leave ~25% headroom for Mosaic-internal scratch.
    return (_vmem_capacity_bytes() * 3) // 4


def _vmem_limit_bytes():
    # Scoped-VMEM limit: below physical capacity on every generation.
    return int(_vmem_capacity_bytes() * 9) // 10


# ----------------------------- Pallas kernels --------------------------------
def _cconv_resident_kernel(pr_ref, pi_ref, w1_ref, w2_ref, b_ref, out_ref):
    """Weights VMEM-resident (no K grid axis).  One (tm, oc2) output tile:
       [o_r | o_i] = P_r @ [w_r|w_i] + P_i @ [-w_i|w_r] + [b_r-b_i|b_r+b_i]."""
    out_ref[...] = (
        jnp.dot(pr_ref[...], w1_ref[...], preferred_element_type=jnp.float32)
        + jnp.dot(pi_ref[...], w2_ref[...], preferred_element_type=jnp.float32)
        + b_ref[...]).astype(out_ref.dtype)


def _cconv_stream_kernel(pr_ref, pi_ref, w1_ref, w2_ref, b_ref, out_ref):
    """K tiled as trailing 'arbitrary' grid axis.  Accumulate directly into the
    f32 output block (resident across k); fused bias is the k==0 init value."""
    k = pl.program_id(1)

    @pl.when(k == 0)
    def _init():
        out_ref[...] = jnp.broadcast_to(b_ref[...], out_ref.shape)

    out_ref[...] += (
        jnp.dot(pr_ref[...], w1_ref[...], preferred_element_type=jnp.float32)
        + jnp.dot(pi_ref[...], w2_ref[...], preferred_element_type=jnp.float32))


# ------------------------- tiling / VMEM heuristics --------------------------
def _tm_candidates(M):
    cands = [t for t in (1024, 512, 256, 128, 64, 32, 16, 8) if t <= M]
    return cands if cands else [M]          # tiny M: one full-extent block


def _choose_tm_resident(M, Kp, oc2, ib, budget):
    w_vmem = 2 * 2 * Kp * oc2 * ib          # w1 + w2 slabs (2 buffers each)
    avail = budget - w_vmem - 2 * oc2 * 4   # minus weights and bias
    for tm in _tm_candidates(M):
        need = 2 * 2 * tm * Kp * ib + 2 * tm * oc2 * 4
        if need <= avail:
            return tm
    return _tm_candidates(M)[-1]


def _choose_stream_tiles(M, Kp, oc2, ib, budget):
    units = Kp // 128
    tk_opts = sorted({128 * d for d in range(1, units + 1)
                      if units % d == 0 and 128 * d <= 2048}, reverse=True)
    for tm in _tm_candidates(M):            # prefer few M tiles: weights are
        for tk in tk_opts:                  # re-streamed once per M tile
            need = (2 * 2 * tm * tk * ib    # P_r / P_i tiles, double-buffered
                    + 2 * 2 * tk * oc2 * ib # w1 / w2 tiles, double-buffered
                    + 2 * tm * oc2 * 4      # f32 output / accumulator tile
                    + 2 * oc2 * 4)          # bias
            if need <= budget:
                return tm, tk
    return _tm_candidates(M)[-1], 128


# ------------------------------ GEMM wrapper ---------------------------------
def _cconv_gemm(p_r, p_i, w1, w2, bias2, *, resident, budget):
    """p_[ri]: (M, Kp)   w[12]: (Kp, oc2)   bias2: (1, oc2) f32
    -> (M, oc2) f32 with columns [o_r(0:OC) | o_i(0:OC) | pad]."""
    M, Kp = p_r.shape
    oc2 = w1.shape[1]
    ib = jnp.dtype(p_r.dtype).itemsize

    if resident:
        tm = _choose_tm_resident(M, Kp, oc2, ib, budget)
        grid = (pl.cdiv(M, tm),)
        in_specs = [
            pl.BlockSpec((tm, Kp), lambda i: (i, 0)),     # P_r rows
            pl.BlockSpec((tm, Kp), lambda i: (i, 0)),     # P_i rows
            pl.BlockSpec((Kp, oc2), lambda i: (0, 0)),    # [ w_r |  w_i] resident
            pl.BlockSpec((Kp, oc2), lambda i: (0, 0)),    # [-w_i |  w_r] resident
            pl.BlockSpec((1, oc2), lambda i: (0, 0)),     # fused bias
        ]
        out_spec = pl.BlockSpec((tm, oc2), lambda i: (i, 0))
        kernel = _cconv_resident_kernel
        dims = ("parallel",)
    else:
        tm, tk = _choose_stream_tiles(M, Kp, oc2, ib, budget)
        grid = (pl.cdiv(M, tm), Kp // tk)
        in_specs = [
            pl.BlockSpec((tm, tk), lambda i, k: (i, k)),
            pl.BlockSpec((tm, tk), lambda i, k: (i, k)),
            pl.BlockSpec((tk, oc2), lambda i, k: (k, 0)),
            pl.BlockSpec((tk, oc2), lambda i, k: (k, 0)),
            pl.BlockSpec((1, oc2), lambda i, k: (0, 0)),
        ]
        out_spec = pl.BlockSpec((tm, oc2), lambda i, k: (i, 0))
        kernel = _cconv_stream_kernel
        dims = ("parallel", "arbitrary")

    return pl.pallas_call(
        kernel,
        out_shape=jax.ShapeDtypeStruct((M, oc2), jnp.float32),
        grid_spec=pltpu.PrefetchScalarGridSpec(
            num_scalar_prefetch=0,
            grid=grid,
            in_specs=in_specs,
            out_specs=out_spec),
        compiler_params=pltpu.CompilerParams(
            dimension_semantics=dims,
            vmem_limit_bytes=_vmem_limit_bytes()),
    )(p_r, p_i, w1, w2, bias2)


# ------------------------------- JAX glue ------------------------------------
def _im2col_nhwc(x_nhwc, kh, kw, stride, padding, dilation, k_pad):
    """x: (N, H, W, C) -> (N*OH*OW, KH*KW*C + k_pad).  Column ordering is
    (kh, kw, c) so it matches weight.transpose(2,3,1,0).reshape(K, OC); the
    zero K-padding is fused into the single concatenate (no extra pad pass)."""
    N, H, W, C = x_nhwc.shape
    OH = (H + 2 * padding - dilation * (kh - 1) - 1) // stride + 1
    OW = (W + 2 * padding - dilation * (kw - 1) - 1) // stride + 1
    xp = jnp.pad(x_nhwc, ((0, 0), (padding, padding), (padding, padding), (0, 0)))

    cols = []
    for i in range(kh):
        for j in range(kw):
            r0 = i * dilation
            c0 = j * dilation
            cols.append(xp[:, r0:r0 + stride * (OH - 1) + 1:stride,
                              c0:c0 + stride * (OW - 1) + 1:stride, :])
    if k_pad:
        cols.append(jnp.zeros((N, OH, OW, k_pad), x_nhwc.dtype))
    col = jnp.concatenate(cols, axis=-1) if len(cols) > 1 else cols[0]
    return col.reshape(N * OH * OW, kh * kw * C + k_pad), OH, OW


@functools.partial(jax.jit, static_argnames=(
    "kh", "kw", "stride", "padding", "dilation", "oc", "resident", "budget"))
def _cconv2d_forward(x_r, x_i, w1, w2, bias2, *, kh, kw, stride, padding,
                     dilation, oc, resident, budget):
    N, C, H, W = x_r.shape
    cd = w1.dtype
    K = C * kh * kw
    k_pad = w1.shape[0] - K

    # NCHW -> NHWC once (input-sized transpose), cast to the compute dtype, and
    # build the patch slab channels-last directly in its GEMM layout.
    xr = jnp.transpose(x_r, (0, 2, 3, 1)).astype(cd)
    xi = jnp.transpose(x_i, (0, 2, 3, 1)).astype(cd)
    p_r, OH, OW = _im2col_nhwc(xr, kh, kw, stride, padding, dilation, k_pad)
    p_i, _, _ = _im2col_nhwc(xi, kh, kw, stride, padding, dilation, k_pad)

    out = _cconv_gemm(p_r, p_i, w1, w2, bias2, resident=resident, budget=budget)

    # (M, oc2) f32 -> two NCHW tensors (padded columns discarded here).
    o_r = out[:, :oc].reshape(N, OH, OW, oc).transpose(0, 3, 1, 2)
    o_i = out[:, oc:2 * oc].reshape(N, OH, OW, oc).transpose(0, 3, 1, 2)
    return o_r, o_i


class CConv2dPallas:
    """Complex Conv2d (PyTorch CConv2d) with deterministic uniform init."""

    def __init__(self, in_channels, out_channels, kernel_size, stride=1,
                 padding=0, dilation=1, groups=1, bias=True, key=None,
                 dtype=jnp.float32, compute_dtype=jnp.bfloat16):
        assert groups == 1, "groups != 1 not supported"  # TODO(synk): groups
        if key is None:
            key = jax.random.PRNGKey(0)
        self.in_channels = in_channels
        self.out_channels = out_channels
        self.kh = self.kw = kernel_size
        self.stride = stride
        self.padding = padding
        self.dilation = dilation
        self.use_bias = bias
        self.compute_dtype = compute_dtype

        fan_in = in_channels * self.kh * self.kw
        bound = 1.0 / math.sqrt(fan_in)
        k_wr, k_wi, k_br, k_bi = jax.random.split(key, 4)
        wshape = (out_channels, in_channels, self.kh, self.kw)
        self.w_r = jax.random.uniform(k_wr, wshape, dtype, -bound, bound)
        self.w_i = jax.random.uniform(k_wi, wshape, dtype, -bound, bound)
        if bias:
            self.b_r = jax.random.uniform(k_br, (out_channels,), dtype, -bound, bound)
            self.b_i = jax.random.uniform(k_bi, (out_channels,), dtype, -bound, bound)
        else:
            self.b_r = jnp.zeros((out_channels,), dtype)
            self.b_i = jnp.zeros((out_channels,), dtype)

        # ---- fused GEMM operands, built ONCE at init, stored in bf16 ---------
        #   [o_r | o_i] = P_r @ [w_r|w_i] + P_i @ [-w_i|w_r] + [b_r-b_i|b_r+b_i]
        # Columns packed contiguously: [0:OC)=real, [OC:2OC)=imag, then pad so
        # the combined width is a multiple of 128 (lane-dense output slab).
        # Rows ordered (kh, kw, c) to match the NHWC channels-last im2col, and
        # K padded to a multiple of 128 for lane-aligned contraction tiling.
        oc = out_channels
        K = fan_in
        self.K = K
        self.K_pad = _round_up(K, 128)
        self.oc2 = _round_up(2 * oc, 128)

        wr_mat = jnp.transpose(self.w_r, (2, 3, 1, 0)).reshape(K, oc)  # (K, OC)
        wi_mat = jnp.transpose(self.w_i, (2, 3, 1, 0)).reshape(K, oc)

        w1 = jnp.zeros((self.K_pad, self.oc2), jnp.float32)
        w1 = w1.at[:K, :oc].set(wr_mat).at[:K, oc:2 * oc].set(wi_mat)
        w2 = jnp.zeros((self.K_pad, self.oc2), jnp.float32)
        w2 = w2.at[:K, :oc].set(-wi_mat).at[:K, oc:2 * oc].set(wr_mat)
        self.w1 = w1.astype(compute_dtype)
        self.w2 = w2.astype(compute_dtype)

        bias2 = jnp.zeros((1, self.oc2), jnp.float32)      # bias stays f32
        bias2 = bias2.at[0, :oc].set(self.b_r - self.b_i)
        bias2 = bias2.at[0, oc:2 * oc].set(self.b_r + self.b_i)
        self.bias2 = bias2

        # Generation-aware VMEM budget and weight-residency decision.
        ib = jnp.dtype(compute_dtype).itemsize
        self.budget = _vmem_budget_bytes()
        probe = (2 * 2 * self.K_pad * self.oc2 * ib   # both weight slabs (2 bufs)
                 + 2 * 2 * 128 * self.K_pad * ib      # P_r/P_i tiles at tm=128
                 + 2 * 128 * self.oc2 * 4             # output tile
                 + 2 * self.oc2 * 4)                  # bias
        self.resident = probe <= self.budget

    def __call__(self, x_r, x_i):
        return _cconv2d_forward(
            x_r, x_i, self.w1, self.w2, self.bias2,
            kh=self.kh, kw=self.kw, stride=self.stride, padding=self.padding,
            dilation=self.dilation, oc=self.out_channels,
            resident=self.resident, budget=self.budget)


# ------------------------------- reference -----------------------------------
def _conv_ref(x, w, b, stride, padding, dilation):
    out = jax.lax.conv_general_dilated(
        x, w,
        window_strides=(stride, stride),
        padding=[(padding, padding), (padding, padding)],
        rhs_dilation=(dilation, dilation),
        dimension_numbers=("NCHW", "OIHW", "NCHW"))
    return out + b.reshape(1, -1, 1, 1)


def _cconv_ref(mod, x_r, x_i):
    cr = functools.partial(_conv_ref, w=mod.w_r, b=mod.b_r,
                           stride=mod.stride, padding=mod.padding,
                           dilation=mod.dilation)
    ci = functools.partial(_conv_ref, w=mod.w_i, b=mod.b_i,
                           stride=mod.stride, padding=mod.padding,
                           dilation=mod.dilation)
    return cr(x_r) - ci(x_i), cr(x_i) + ci(x_r)


# ---------------------------------- main --------------------------------------
if __name__ == "__main__":
    key = jax.random.PRNGKey(0)
    k_in_r, k_in_i, k_params = jax.random.split(key, 3)

    N, C, H, W = 2, 4, 16, 16
    OC, KS, STRIDE, PAD = 8, 3, 1, 1

    x_r = jax.random.normal(k_in_r, (N, C, H, W), jnp.float32)
    x_i = jax.random.normal(k_in_i, (N, C, H, W), jnp.float32)

    # Fast path: bf16 matmul operands, f32 MXU accumulation.
    mod = CConv2dPallas(C, OC, KS, stride=STRIDE, padding=PAD, key=k_params)
    o_r, o_i = mod(x_r, x_i)
    jax.block_until_ready((o_r, o_i))

    ref_r, ref_i = _cconv_ref(mod, x_r, x_i)
    assert o_r.shape == ref_r.shape and o_i.shape == ref_i.shape
    assert jnp.allclose(o_r, ref_r, atol=2e-2, rtol=2e-2)   # bf16-operand tol
    assert jnp.allclose(o_i, ref_i, atol=2e-2, rtol=2e-2)

    # Same kernel, f32 operands (identical params: same PRNG key) -> tight tol.
    mod32 = CConv2dPallas(C, OC, KS, stride=STRIDE, padding=PAD, key=k_params,
                          compute_dtype=jnp.float32)
    o_r32, o_i32 = mod32(x_r, x_i)
    jax.block_until_ready((o_r32, o_i32))
    assert jnp.allclose(o_r32, ref_r, atol=1e-4, rtol=1e-4)
    assert jnp.allclose(o_i32, ref_i, atol=1e-4, rtol=1e-4)

    print("KERNEL_OK")
</pallas_src>

<mosaic_0001>
module attributes {stable_mosaic.version = 11 : i64} {
  func.func @_cconv_resident_kernel(%arg0: i32, %arg1: memref<512x128xbf16, #tpu.memory_space<vmem>>, %arg2: memref<512x128xbf16, #tpu.memory_space<vmem>>, %arg3: memref<128x128xbf16, #tpu.memory_space<vmem>>, %arg4: memref<128x128xbf16, #tpu.memory_space<vmem>>, %arg5: memref<1x128xf32, #tpu.memory_space<vmem>>, %arg6: memref<512x128xf32, #tpu.memory_space<vmem>>) attributes {dimension_semantics = [#tpu.dimension_semantics<parallel>], iteration_bounds = array<i64: 1>, scalar_prefetch = 0 : i64, scratch_operands = 0 : i64, tpu.core_type = #tpu.core_type<tc>, window_params = [{transform_indices = @transform_0, window_bounds = array<i64: 512, 128>}, {transform_indices = @transform_1, window_bounds = array<i64: 512, 128>}, {pipeline_mode = #tpu.pipeline_mode<synchronous>, transform_indices = @transform_2, window_bounds = array<i64: 128, 128>}, {pipeline_mode = #tpu.pipeline_mode<synchronous>, transform_indices = @transform_3, window_bounds = array<i64: 128, 128>}, {pipeline_mode = #tpu.pipeline_mode<synchronous>, transform_indices = @transform_4, window_bounds = array<i64: 1, 128>}, {transform_indices = @transform_5, window_bounds = array<i64: 512, 128>}]} {
    %c0 = arith.constant 0 : index
    %c0_0 = arith.constant 0 : index
    %0 = vector.load %arg1[%c0, %c0_0] : memref<512x128xbf16, #tpu.memory_space<vmem>>, vector<512x128xbf16>
    %c0_1 = arith.constant 0 : index
    %c0_2 = arith.constant 0 : index
    %1 = vector.load %arg3[%c0_1, %c0_2] : memref<128x128xbf16, #tpu.memory_space<vmem>>, vector<128x128xbf16>
    %cst = arith.constant dense<0.000000e+00> : vector<512x128xf32>
    %2 = tpu.matmul %0, %1, %cst {dimension_numbers = #tpu.dot_dimension_numbers<[1], [0], [0], [1], [0, 0, 1, 1], [], []>} : vector<512x128xbf16>, vector<128x128xbf16>, vector<512x128xf32> -> vector<512x128xf32>
    %c0_3 = arith.constant 0 : index
    %c0_4 = arith.constant 0 : index
    %3 = vector.load %arg2[%c0_3, %c0_4] : memref<512x128xbf16, #tpu.memory_space<vmem>>, vector<512x128xbf16>
    %c0_5 = arith.constant 0 : index
    %c0_6 = arith.constant 0 : index
    %4 = vector.load %arg4[%c0_5, %c0_6] : memref<128x128xbf16, #tpu.memory_space<vmem>>, vector<128x128xbf16>
    %cst_7 = arith.constant dense<0.000000e+00> : vector<512x128xf32>
    %5 = tpu.matmul %3, %4, %cst_7 {dimension_numbers = #tpu.dot_dimension_numbers<[1], [0], [0], [1], [0, 0, 1, 1], [], []>} : vector<512x128xbf16>, vector<128x128xbf16>, vector<512x128xf32> -> vector<512x128xf32>
    %6 = arith.addf %2, %5 : vector<512x128xf32>
    %c0_8 = arith.constant 0 : index
    %c0_9 = arith.constant 0 : index
    %7 = vector.load %arg5[%c0_8, %c0_9] : memref<1x128xf32, #tpu.memory_space<vmem>>, vector<1x128xf32>
    %8 = vector.broadcast %7 : vector<1x128xf32> to vector<512x128xf32>
    %9 = arith.addf %6, %8 : vector<512x128xf32>
    %c0_10 = arith.constant 0 : index
    %c0_11 = arith.constant 0 : index
    %10 = vector.load %arg6[%c0_10, %c0_11] : memref<512x128xf32, #tpu.memory_space<vmem>>, vector<512x128xf32>
    tpu.vector_store %arg6[%c0_10, %c0_11], %9 {strides = array<i32>} : memref<512x128xf32, #tpu.memory_space<vmem>>, vector<512x128xf32>,
    return
  }
  func.func @transform_0(%arg0: i32) -> (i32, i32) {
    %c0_i32 = arith.constant 0 : i32
    %c0_i32_0 = arith.constant 0 : i32
    return %arg0, %c0_i32 : i32, i32
  }
  func.func @transform_1(%arg0: i32) -> (i32, i32) {
    %c0_i32 = arith.constant 0 : i32
    %c0_i32_0 = arith.constant 0 : i32
    return %arg0, %c0_i32 : i32, i32
  }
  func.func @transform_2(%arg0: i32) -> (i32, i32) {
    %c0_i32 = arith.constant 0 : i32
    %c0_i32_0 = arith.constant 0 : i32
    %c0_i32_1 = arith.constant 0 : i32
    return %c0_i32, %c0_i32_0 : i32, i32
  }
  func.func @transform_3(%arg0: i32) -> (i32, i32) {
    %c0_i32 = arith.constant 0 : i32
    %c0_i32_0 = arith.constant 0 : i32
    %c0_i32_1 = arith.constant 0 : i32
    return %c0_i32, %c0_i32_0 : i32, i32
  }
  func.func @transform_4(%arg0: i32) -> (i32, i32) {
    %c0_i32 = arith.constant 0 : i32
    %c0_i32_0 = arith.constant 0 : i32
    %c0_i32_1 = arith.constant 0 : i32
    return %c0_i32, %c0_i32_0 : i32, i32
  }
  func.func @transform_5(%arg0: i32) -> (i32, i32) {
    %c0_i32 = arith.constant 0 : i32
    %c0_i32_0 = arith.constant 0 : i32
    return %arg0, %c0_i32 : i32, i32
  }
}

</mosaic_0001>

<llo_original>
// kernel: _cconv2d_forward.1
$region0: #{_cconv2d_forward.1}
  #allocation0 [shape = 'u32[]', space=smem, size = 0x4, offset = 0x4, fixed_abs, tag = 'smem constant byte address 0x4 - core index']
  #allocation1 [shape = 'u32[144,128]{1,0:T(1,128)}', space=vmem, size = 0x12000, scoped, tag = 'internal scratch']
  %s0 = inlined_call_operand.vmem [shape: bf16[512,128], index: 0, kind: input, shape index: {}]
  %s1 = inlined_call_operand.vmem [shape: bf16[512,128], index: 1, kind: input, shape index: {}]
  %s2 = inlined_call_operand.vmem [shape: bf16[128,128], index: 2, kind: input, shape index: {}]
  %s3 = inlined_call_operand.vmem [shape: bf16[128,128], index: 3, kind: input, shape index: {}]
  %s4 = inlined_call_operand.vmem [shape: f32[1,128], index: 4, kind: input, shape index: {}]
  %s5 = inlined_call_operand.vmem [shape: f32[512,128], index: 5, kind: output, shape index: {}]
  %s6 = sld [smem:[#allocation0]]
  $region30: #{_cconv2d_forward.1} parent=0
    _
  %s8 = ssub.s32 1, %s6
  %s9 = scalar_select 0, %s8, %s6
  // Predicated region
  $region2: #{_cconv2d_forward.1} parent=0 // pred_check
    _
  $region3: #{_cconv2d_forward.1} parent=0 // pred_check_branch
    %11 = sbr.rel (0) target = $region5
  $region4: #{_cconv2d_forward.1} parent=0 // pred_region
    _
  $region5: #{_cconv2d_forward.1} parent=0 // pred_fallthru
    _
  // Predicated region
  $region6: #{_cconv2d_forward.1} parent=0 // pred_check
    _
  $region7: #{_cconv2d_forward.1} parent=0 // pred_check_branch
    %13 = sbr.rel (0) target = $region9
  $region8: #{_cconv2d_forward.1} parent=0 // pred_region
    _
  $region9: #{_cconv2d_forward.1} parent=0 // pred_fallthru
    _
  // Predicated region
  $region10: #{_cconv2d_forward.1} parent=0 // pred_check
    _
  $region11: #{_cconv2d_forward.1} parent=0 // pred_check_branch
    %15 = sbr.rel (0) target = $region13
  $region12: #{_cconv2d_forward.1} parent=0 // pred_region
    _
  $region13: #{_cconv2d_forward.1} parent=0 // pred_fallthru
    _
  // Predicated region
  $region14: #{_cconv2d_forward.1} parent=0 // pred_check
    _
  $region15: #{_cconv2d_forward.1} parent=0 // pred_check_branch
    %17 = sbr.rel (0) target = $region17
  $region16: #{_cconv2d_forward.1} parent=0 // pred_region
    _
  $region17: #{_cconv2d_forward.1} parent=0 // pred_fallthru
    _
  // Predicated region
  $region18: #{_cconv2d_forward.1} parent=0 // pred_check
    _
  $region19: #{_cconv2d_forward.1} parent=0 // pred_check_branch
    %19 = sbr.rel (0) target = $region21
  $region20: #{_cconv2d_forward.1} parent=0 // pred_region
    _
  $region21: #{_cconv2d_forward.1} parent=0 // pred_fallthru
    _
  %v21 = vld [vmem:[%s0] sm:$0xf]
  %v22 = vld [vmem:[%s0 + $0x4] sm:$0xf]
  %v23 = vld [vmem:[%s0 + $0x8] sm:$0xf]
  %v24 = vld [vmem:[%s0 + $0xc] sm:$0xf]
  %v25 = vld [vmem:[%s0 + $0x10] sm:$0xf]
  %v26 = vld [vmem:[%s0 + $0x14] sm:$0xf]
  %v27 = vld [vmem:[%s0 + $0x18] sm:$0xf]
  %v28 = vld [vmem:[%s0 + $0x1c] sm:$0xf]
  %v29 = vld [vmem:[%s0 + $0x20] sm:$0xf]
  %v30 = vld [vmem:[%s0 + $0x24] sm:$0xf]
  %v31 = vld [vmem:[%s0 + $0x28] sm:$0xf]
  %v32 = vld [vmem:[%s0 + $0x2c] sm:$0xf]
  %v33 = vld [vmem:[%s0 + $0x30] sm:$0xf]
  %v34 = vld [vmem:[%s0 + $0x34] sm:$0xf]
  %v35 = vld [vmem:[%s0 + $0x38] sm:$0xf]
  %v36 = vld [vmem:[%s0 + $0x3c] sm:$0xf]
  %v37 = vld [vmem:[%s0 + $0x40] sm:$0xf]
  %v38 = vld [vmem:[%s0 + $0x44] sm:$0xf]
  %v39 = vld [vmem:[%s0 + $0x48] sm:$0xf]
  %v40 = vld [vmem:[%s0 + $0x4c] sm:$0xf]
  %v41 = vld [vmem:[%s0 + $0x50] sm:$0xf]
  %v42 = vld [vmem:[%s0 + $0x54] sm:$0xf]
  %v43 = vld [vmem:[%s0 + $0x58] sm:$0xf]
  %v44 = vld [vmem:[%s0 + $0x5c] sm:$0xf]
  %v45 = vld [vmem:[%s0 + $0x60] sm:$0xf]
  %v46 = vld [vmem:[%s0 + $0x64] sm:$0xf]
  %v47 = vld [vmem:[%s0 + $0x68] sm:$0xf]
  %v48 = vld [vmem:[%s0 + $0x6c] sm:$0xf]
  %v49 = vld [vmem:[%s0 + $0x70] sm:$0xf]
  %v50 = vld [vmem:[%s0 + $0x74] sm:$0xf]
  %v51 = vld [vmem:[%s0 + $0x78] sm:$0xf]
  %v52 = vld [vmem:[%s0 + $0x7c] sm:$0xf]
  %v53 = vld [vmem:[%s0 + $0x80] sm:$0xf]
  %v54 = vld [vmem:[%s0 + $0x84] sm:$0xf]
  %v55 = vld [vmem:[%s0 + $0x88] sm:$0xf]
  %v56 = vld [vmem:[%s0 + $0x8c] sm:$0xf]
  %v57 = vld [vmem:[%s0 + $0x90] sm:$0xf]
  %v58 = vld [vmem:[%s0 + $0x94] sm:$0xf]
  %v59 = vld [vmem:[%s0 + $0x98] sm:$0xf]
  %v60 = vld [vmem:[%s0 + $0x9c] sm:$0xf]
  %v61 = vld [vmem:[%s0 + $0xa0] sm:$0xf]
  %v62 = vld [vmem:[%s0 + $0xa4] sm:$0xf]
  %v63 = vld [vmem:[%s0 + $0xa8] sm:$0xf]
  %v64 = vld [vmem:[%s0 + $0xac] sm:$0xf]
  %v65 = vld [vmem:[%s0 + $0xb0] sm:$0xf]
  %v66 = vld [vmem:[%s0 + $0xb4] sm:$0xf]
  %v67 = vld [vmem:[%s0 + $0xb8] sm:$0xf]
  %v68 = vld [vmem:[%s0 + $0xbc] sm:$0xf]
  %v69 = vld [vmem:[%s0 + $0xc0] sm:$0xf]
  %v70 = vld [vmem:[%s0 + $0xc4] sm:$0xf]
  %v71 = vld [vmem:[%s0 + $0xc8] sm:$0xf]
  %v72 = vld [vmem:[%s0 + $0xcc] sm:$0xf]
  %v73 = vld [vmem:[%s0 + $0xd0] sm:$0xf]
  %v74 = vld [vmem:[%s0 + $0xd4] sm:$0xf]
  %v75 = vld [vmem:[%s0 + $0xd8] sm:$0xf]
  %v76 = vld [vmem:[%s0 + $0xdc] sm:$0xf]
  %v77 = vld [vmem:[%s0 + $0xe0] sm:$0xf]
  %v78 = vld [vmem:[%s0 + $0xe4] sm:$0xf]
  %v79 = vld [vmem:[%s0 + $0xe8] sm:$0xf]
  %v80 = vld [vmem:[%s0 + $0xec] sm:$0xf]
  %v81 = vld [vmem:[%s0 + $0xf0] sm:$0xf]
  %v82 = vld [vmem:[%s0 + $0xf4] sm:$0xf]
  %v83 = vld [vmem:[%s0 + $0xf8] sm:$0xf]
  %v84 = vld [vmem:[%s0 + $0xfc] sm:$0xf]
  %v85 = vld [vmem:[%s2] sm:$0xf]
  %v86 = vld [vmem:[%s2 + $0x4] sm:$0xf]
  %v87 = vld [vmem:[%s2 + $0x8] sm:$0xf]
  %v88 = vld [vmem:[%s2 + $0xc] sm:$0xf]
  %v89 = vld [vmem:[%s2 + $0x10] sm:$0xf]
  %v90 = vld [vmem:[%s2 + $0x14] sm:$0xf]
  %v91 = vld [vmem:[%s2 + $0x18] sm:$0xf]
  %v92 = vld [vmem:[%s2 + $0x1c] sm:$0xf]
  %v93 = vld [vmem:[%s2 + $0x20] sm:$0xf]
  %v94 = vld [vmem:[%s2 + $0x24] sm:$0xf]
  %v95 = vld [vmem:[%s2 + $0x28] sm:$0xf]
  %v96 = vld [vmem:[%s2 + $0x2c] sm:$0xf]
  %v97 = vld [vmem:[%s2 + $0x30] sm:$0xf]
  %v98 = vld [vmem:[%s2 + $0x34] sm:$0xf]
  %v99 = vld [vmem:[%s2 + $0x38] sm:$0xf]
  %v100 = vld [vmem:[%s2 + $0x3c] sm:$0xf]
  %v101 = vld [vmem:[%s1] sm:$0xf]
  %v102 = vld [vmem:[%s1 + $0x4] sm:$0xf]
  %v103 = vld [vmem:[%s1 + $0x8] sm:$0xf]
  %v104 = vld [vmem:[%s1 + $0xc] sm:$0xf]
  %v105 = vld [vmem:[%s1 + $0x10] sm:$0xf]
  %v106 = vld [vmem:[%s1 + $0x14] sm:$0xf]
  %v107 = vld [vmem:[%s1 + $0x18] sm:$0xf]
  %v108 = vld [vmem:[%s1 + $0x1c] sm:$0xf]
  %v109 = vld [vmem:[%s1 + $0x20] sm:$0xf]
  %v110 = vld [vmem:[%s1 + $0x24] sm:$0xf]
  %v111 = vld [vmem:[%s1 + $0x28] sm:$0xf]
  %v112 = vld [vmem:[%s1 + $0x2c] sm:$0xf]
  %v113 = vld [vmem:[%s1 + $0x30] sm:$0xf]
  %v114 = vld [vmem:[%s1 + $0x34] sm:$0xf]
  %v115 = vld [vmem:[%s1 + $0x38] sm:$0xf]
  %v116 = vld [vmem:[%s1 + $0x3c] sm:$0xf]
  %v117 = vld [vmem:[%s1 + $0x40] sm:$0xf]
  %v118 = vld [vmem:[%s1 + $0x44] sm:$0xf]
  %v119 = vld [vmem:[%s1 + $0x48] sm:$0xf]
  %v120 = vld [vmem:[%s1 + $0x4c] sm:$0xf]
  %v121 = vld [vmem:[%s1 + $0x50] sm:$0xf]
  %v122 = vld [vmem:[%s1 + $0x54] sm:$0xf]
  %v123 = vld [vmem:[%s1 + $0x58] sm:$0xf]
  %v124 = vld [vmem:[%s1 + $0x5c] sm:$0xf]
  %v125 = vld [vmem:[%s1 + $0x60] sm:$0xf]
  %v126 = vld [vmem:[%s1 + $0x64] sm:$0xf]
  %v127 = vld [vmem:[%s1 + $0x68] sm:$0xf]
  %v128 = vld [vmem:[%s1 + $0x6c] sm:$0xf]
  %v129 = vld [vmem:[%s1 + $0x70] sm:$0xf]
  %v130 = vld [vmem:[%s1 + $0x74] sm:$0xf]
  %v131 = vld [vmem:[%s1 + $0x78] sm:$0xf]
  %v132 = vld [vmem:[%s1 + $0x7c] sm:$0xf]
  %v133 = vld [vmem:[%s1 + $0x80] sm:$0xf]
  %v134 = vld [vmem:[%s1 + $0x84] sm:$0xf]
  %v135 = vld [vmem:[%s1 + $0x88] sm:$0xf]
  %v136 = vld [vmem:[%s1 + $0x8c] sm:$0xf]
  %v137 = vld [vmem:[%s1 + $0x90] sm:$0xf]
  %v138 = vld [vmem:[%s1 + $0x94] sm:$0xf]
  %v139 = vld [vmem:[%s1 + $0x98] sm:$0xf]
  %v140 = vld [vmem:[%s1 + $0x9c] sm:$0xf]
  %v141 = vld [vmem:[%s1 + $0xa0] sm:$0xf]
  %v142 = vld [vmem:[%s1 + $0xa4] sm:$0xf]
  %v143 = vld [vmem:[%s1 + $0xa8] sm:$0xf]
  %v144 = vld [vmem:[%s1 + $0xac] sm:$0xf]
  %v145 = vld [vmem:[%s1 + $0xb0] sm:$0xf]
  %v146 = vld [vmem:[%s1 + $0xb4] sm:$0xf]
  %v147 = vld [vmem:[%s1 + $0xb8] sm:$0xf]
  %v148 = vld [vmem:[%s1 + $0xbc] sm:$0xf]
  %v149 = vld [vmem:[%s1 + $0xc0] sm:$0xf]
  %v150 = vld [vmem:[%s1 + $0xc4] sm:$0xf]
  %v151 = vld [vmem:[%s1 + $0xc8] sm:$0xf]
  %v152 = vld [vmem:[%s1 + $0xcc] sm:$0xf]
  %v153 = vld [vmem:[%s1 + $0xd0] sm:$0xf]
  %v154 = vld [vmem:[%s1 + $0xd4] sm:$0xf]
  %v155 = vld [vmem:[%s1 + $0xd8] sm:$0xf]
  %v156 = vld [vmem:[%s1 + $0xdc] sm:$0xf]
  %v157 = vld [vmem:[%s1 + $0xe0] sm:$0xf]
  %v158 = vld [vmem:[%s1 + $0xe4] sm:$0xf]
  %v159 = vld [vmem:[%s1 + $0xe8] sm:$0xf]
  %v160 = vld [vmem:[%s1 + $0xec] sm:$0xf]
  %v161 = vld [vmem:[%s1 + $0xf0] sm:$0xf]
  %v162 = vld [vmem:[%s1 + $0xf4] sm:$0xf]
  %v163 = vld [vmem:[%s1 + $0xf8] sm:$0xf]
  %v164 = vld [vmem:[%s1 + $0xfc] sm:$0xf]
  %v165 = vld [vmem:[%s3] sm:$0xf]
  %v166 = vld [vmem:[%s3 + $0x4] sm:$0xf]
  %v167 = vld [vmem:[%s3 + $0x8] sm:$0xf]
  %v168 = vld [vmem:[%s3 + $0xc] sm:$0xf]
  %v169 = vld [vmem:[%s3 + $0x10] sm:$0xf]
  %v170 = vld [vmem:[%s3 + $0x14] sm:$0xf]
  %v171 = vld [vmem:[%s3 + $0x18] sm:$0xf]
  %v172 = vld [vmem:[%s3 + $0x1c] sm:$0xf]
  %v173 = vld [vmem:[%s3 + $0x20] sm:$0xf]
  %v174 = vld [vmem:[%s3 + $0x24] sm:$0xf]
  %v175 = vld [vmem:[%s3 + $0x28] sm:$0xf]
  %v176 = vld [vmem:[%s3 + $0x2c] sm:$0xf]
  %v177 = vld [vmem:[%s3 + $0x30] sm:$0xf]
  %v178 = vld [vmem:[%s3 + $0x34] sm:$0xf]
  %v179 = vld [vmem:[%s3 + $0x38] sm:$0xf]
  %v180 = vld [vmem:[%s3 + $0x3c] sm:$0xf]
  %v245 = vunpack.c.l.b16 %v101
  %v246 = vunpack.c.l.b16 %v102
  %v247 = vunpack.c.l.b16 %v103
  %v248 = vunpack.c.l.b16 %v104
  %v249 = vunpack.c.l.b16 %v105
  %v250 = vunpack.c.l.b16 %v106
  %v251 = vunpack.c.l.b16 %v107
  %v252 = vunpack.c.l.b16 %v108
  %v253 = vunpack.c.l.b16 %v109
  %v254 = vunpack.c.l.b16 %v110
  %v255 = vunpack.c.l.b16 %v111
  %v256 = vunpack.c.l.b16 %v112
  %v257 = vunpack.c.l.b16 %v113
  %v258 = vunpack.c.l.b16 %v114
  %v259 = vunpack.c.l.b16 %v115
  %v260 = vunpack.c.l.b16 %v116
  %v261 = vunpack.c.l.b16 %v117
  %v262 = vunpack.c.l.b16 %v118
  %v263 = vunpack.c.l.b16 %v119
  %v264 = vunpack.c.l.b16 %v120
  %v265 = vunpack.c.l.b16 %v121
  %v266 = vunpack.c.l.b16 %v122
  %v267 = vunpack.c.l.b16 %v123
  %v268 = vunpack.c.l.b16 %v124
  %v269 = vunpack.c.l.b16 %v125
  %v270 = vunpack.c.l.b16 %v126
  %v271 = vunpack.c.l.b16 %v127
  %v272 = vunpack.c.l.b16 %v128
  %v273 = vunpack.c.l.b16 %v129
  %v274 = vunpack.c.l.b16 %v130
  %v275 = vunpack.c.l.b16 %v131
  %v276 = vunpack.c.l.b16 %v132
  %v277 = vunpack.c.l.b16 %v133
  %v278 = vunpack.c.l.b16 %v134
  %v279 = vunpack.c.l.b16 %v135
  %v280 = vunpack.c.l.b16 %v136
  %v281 = vunpack.c.l.b16 %v137
  %v282 = vunpack.c.l.b16 %v138
  %v283 = vunpack.c.l.b16 %v139
  %v284 = vunpack.c.l.b16 %v140
  %v285 = vunpack.c.l.b16 %v141
  %v286 = vunpack.c.l.b16 %v142
  %v287 = vunpack.c.l.b16 %v143
  %v288 = vunpack.c.l.b16 %v144
  %v289 = vunpack.c.l.b16 %v145
  %v290 = vunpack.c.l.b16 %v146
  %v291 = vunpack.c.l.b16 %v147
  %v292 = vunpack.c.l.b16 %v148
  %v293 = vunpack.c.l.b16 %v149
  %v294 = vunpack.c.l.b16 %v150
  %v295 = vunpack.c.l.b16 %v151
  %v296 = vunpack.c.l.b16 %v152
  %v297 = vunpack.c.l.b16 %v153
  %v298 = vunpack.c.l.b16 %v154
  %v299 = vunpack.c.l.b16 %v155
  %v300 = vunpack.c.l.b16 %v156
  %v301 = vunpack.c.l.b16 %v157
  %v302 = vunpack.c.l.b16 %v158
  %v303 = vunpack.c.l.b16 %v159
  %v304 = vunpack.c.l.b16 %v160
  %v305 = vunpack.c.l.b16 %v161
  %v306 = vunpack.c.l.b16 %v162
  %v307 = vunpack.c.l.b16 %v163
  %v308 = vunpack.c.l.b16 %v164
  %v309 = vpack.c.b16 %v246, %v245
  %v310 = vpack.c.b16 %v248, %v247
  %v311 = vpack.c.b16 %v250, %v249
  %v312 = vpack.c.b16 %v252, %v251
  %v313 = vpack.c.b16 %v254, %v253
  %v314 = vpack.c.b16 %v256, %v255
  %v315 = vpack.c.b16 %v258, %v257
  %v316 = vpack.c.b16 %v260, %v259
  %v317 = vpack.c.b16 %v262, %v261
  %v318 = vpack.c.b16 %v264, %v263
  %v319 = vpack.c.b16 %v266, %v265
  %v320 = vpack.c.b16 %v268, %v267
  %v321 = vpack.c.b16 %v270, %v269
  %v322 = vpack.c.b16 %v272, %v271
  %v323 = vpack.c.b16 %v274, %v273
  %v324 = vpack.c.b16 %v276, %v275
  %v325 = vpack.c.b16 %v278, %v277
  %v326 = vpack.c.b16 %v280, %v279
  %v327 = vpack.c.b16 %v282, %v281
  %v328 = vpack.c.b16 %v284, %v283
  %v329 = vpack.c.b16 %v286, %v285
  %v330 = vpack.c.b16 %v288, %v287
  %v331 = vpack.c.b16 %v290, %v289
  %v332 = vpack.c.b16 %v292, %v291
  %v333 = vpack.c.b16 %v294, %v293
  %v334 = vpack.c.b16 %v296, %v295
  %v335 = vpack.c.b16 %v298, %v297
  %v336 = vpack.c.b16 %v300, %v299
  %v337 = vpack.c.b16 %v302, %v301
  %v338 = vpack.c.b16 %v304, %v303
  %v339 = vpack.c.b16 %v306, %v305
  %v340 = vpack.c.b16 %v308, %v307
  %v389 = vunpack.c.l.b16 %v165
  %v390 = vunpack.c.l.b16 %v166
  %v391 = vunpack.c.l.b16 %v167
  %v392 = vunpack.c.l.b16 %v168
  %v393 = vunpack.c.l.b16 %v169
  %v394 = vunpack.c.l.b16 %v170
  %v395 = vunpack.c.l.b16 %v171
  %v396 = vunpack.c.l.b16 %v172
  %v397 = vunpack.c.l.b16 %v173
  %v398 = vunpack.c.l.b16 %v174
  %v399 = vunpack.c.l.b16 %v175
  %v400 = vunpack.c.l.b16 %v176
  %v401 = vunpack.c.l.b16 %v177
  %v402 = vunpack.c.l.b16 %v178
  %v403 = vunpack.c.l.b16 %v179
  %v404 = vunpack.c.l.b16 %v180
  %v405 = vpack.c.b16 %v390, %v389
  %v406 = vpack.c.b16 %v392, %v391
  %v407 = vpack.c.b16 %v394, %v393
  %v408 = vpack.c.b16 %v396, %v395
  %v409 = vpack.c.b16 %v398, %v397
  %v410 = vpack.c.b16 %v400, %v399
  %v411 = vpack.c.b16 %v402, %v401
  %v412 = vpack.c.b16 %v404, %v403
  %421 = vmatprep.subr.bf16.mxu0 0
  %422 = vmatpush1.bf16.msra.mxu0 %v412
  %423 = vmatprep.subr.bf16.mxu0 0
  %424 = vmatpush1.bf16.msra.mxu0 %v411
  %425 = vmatprep.subr.bf16.mxu0 0
  %426 = vmatpush1.bf16.msra.mxu0 %v410
  %427 = vmatprep.subr.bf16.mxu0 0
  %428 = vmatpush1.bf16.msra.mxu0 %v409
  %429 = vmatprep.subr.bf16.mxu0 0
  %430 = vmatpush1.bf16.msra.mxu0 %v408
  %431 = vmatprep.subr.bf16.mxu0 0
  %432 = vmatpush1.bf16.msra.mxu0 %v407
  %433 = vmatprep.subr.bf16.mxu0 0
  %434 = vmatpush1.bf16.msra.mxu0 %v406
  %435 = vmatprep.subr.bf16.mxu0 0
  %436 = vmatpush1.bf16.msra.mxu0 %v405
  %437 = vmatprep.subr.bf16.mxu0 0
  %438 = vmatpush2.bf16.msra.mxu0 0
  %439 = vmatprep.subr.bf16.mxu0 0
  %440 = vmatpush2.bf16.msra.mxu0 0
  %441 = vmatprep.subr.bf16.mxu0 0
  %442 = vmatpush2.bf16.msra.mxu0 0
  %443 = vmatprep.subr.bf16.mxu0 0
  %444 = vmatpush2.bf16.msra.mxu0 0
  %445 = vmatprep.subr.bf16.mxu0 0
  %446 = vmatpush2.bf16.msra.mxu0 0
  %447 = vmatprep.subr.bf16.mxu0 0
  %448 = vmatpush2.bf16.msra.mxu0 0
  %449 = vmatprep.subr.bf16.mxu0 0
  %450 = vmatpush2.bf16.msra.mxu0 0
  %451 = vmatprep.subr.bf16.mxu0 0
  %452 = vmatpush2.bf16.msra.mxu0 0
  %453 = vmatprep.mubr.bf16.mxu0 0
  %454 = vmatmul.mubr.bf16.gmra.mxu0 %v309
  %v455 = vpop.f32.mrf.mxu0
  %v456 = vadd.f32 0.0, %v455
  %v457 = vpop.f32.mrf.mxu0
  %v458 = vpop.f32.mrf.mxu0
  %v459 = vadd.f32 0.0, %v458
  %v460 = vpop.f32.mrf.mxu0
  %461 = vmatprep.mubr.bf16.mxu0 0
  %462 = vmatmul.mubr.bf16.gmra.mxu0 %v310
  %v463 = vpop.f32.mrf.mxu0
  %v464 = vadd.f32 0.0, %v463
  %v465 = vpop.f32.mrf.mxu0
  %v466 = vpop.f32.mrf.mxu0
  %v467 = vadd.f32 0.0, %v466
  %v468 = vpop.f32.mrf.mxu0
  %469 = vmatprep.mubr.bf16.mxu0 0
  %470 = vmatmul.mubr.bf16.gmra.mxu0 %v311
  %v471 = vpop.f32.mrf.mxu0
  %v472 = vadd.f32 0.0, %v471
  %v473 = vpop.f32.mrf.mxu0
  %v474 = vpop.f32.mrf.mxu0
  %v475 = vadd.f32 0.0, %v474
  %v476 = vpop.f32.mrf.mxu0
  %477 = vmatprep.mubr.bf16.mxu0 0
  %478 = vmatmul.mubr.bf16.gmra.mxu0 %v312
  %v479 = vpop.f32.mrf.mxu0
  %v480 = vadd.f32 0.0, %v479
  %v481 = vpop.f32.mrf.mxu0
  %v482 = vpop.f32.mrf.mxu0
  %v483 = vadd.f32 0.0, %v482
  %v484 = vpop.f32.mrf.mxu0
  %485 = vmatprep.mubr.bf16.mxu0 0
  %486 = vmatmul.mubr.bf16.gmra.mxu0 %v313
  %v487 = vpop.f32.mrf.mxu0
  %v488 = vadd.f32 0.0, %v487
  %v489 = vpop.f32.mrf.mxu0
  %v490 = vpop.f32.mrf.mxu0
  %v491 = vadd.f32 0.0, %v490
  %v492 = vpop.f32.mrf.mxu0
  %493 = vmatprep.mubr.bf16.mxu0 0
  %494 = vmatmul.mubr.bf16.gmra.mxu0 %v314
  %v495 = vpop.f32.mrf.mxu0
  %v496 = vadd.f32 0.0, %v495
  %v497 = vpop.f32.mrf.mxu0
  %v498 = vpop.f32.mrf.mxu0
  %v499 = vadd.f32 0.0, %v498
  %v500 = vpop.f32.mrf.mxu0
  %501 = vmatprep.mubr.bf16.mxu0 0
  %502 = vmatmul.mubr.bf16.gmra.mxu0 %v315
  %v503 = vpop.f32.mrf.mxu0
  %v504 = vadd.f32 0.0, %v503
  %v505 = vpop.f32.mrf.mxu0
  %v506 = vpop.f32.mrf.mxu0
  %v507 = vadd.f32 0.0, %v506
  %v508 = vpop.f32.mrf.mxu0
  %509 = vmatprep.mubr.bf16.mxu0 0
  %510 = vmatmul.mubr.bf16.gmra.mxu0 %v316
  %v511 = vpop.f32.mrf.mxu0
  %v512 = vadd.f32 0.0, %v511
  %v513 = vpop.f32.mrf.mxu0
  %v514 = vpop.f32.mrf.mxu0
  %v515 = vadd.f32 0.0, %v514
  %v516 = vpop.f32.mrf.mxu0
  %517 = vmatprep.mubr.bf16.mxu0 0
  %518 = vmatmul.mubr.bf16.gmra.mxu0 %v317
  %v519 = vpop.f32.mrf.mxu0
  %v520 = vadd.f32 0.0, %v519
  %v521 = vpop.f32.mrf.mxu0
  %v522 = vpop.f32.mrf.mxu0
  %v523 = vadd.f32 0.0, %v522
  %v524 = vpop.f32.mrf.mxu0
  %525 = vmatprep.mubr.bf16.mxu0 0
  %526 = vmatmul.mubr.bf16.gmra.mxu0 %v318
  %v527 = vpop.f32.mrf.mxu0
  %v528 = vadd.f32 0.0, %v527
  %v529 = vpop.f32.mrf.mxu0
  %v530 = vpop.f32.mrf.mxu0
  %v531 = vadd.f32 0.0, %v530
  %v532 = vpop.f32.mrf.mxu0
  %533 = vmatprep.mubr.bf16.mxu0 0
  %534 = vmatmul.mubr.bf16.gmra.mxu0 %v319
  %v535 = vpop.f32.mrf.mxu0
  %v536 = vadd.f32 0.0, %v535
  %v537 = vpop.f32.mrf.mxu0
  %v538 = vpop.f32.mrf.mxu0
  %v539 = vadd.f32 0.0, %v538
  %v540 = vpop.f32.mrf.mxu0
  %541 = vmatprep.mubr.bf16.mxu0 0
  %542 = vmatmul.mubr.bf16.gmra.mxu0 %v320
  %v543 = vpop.f32.mrf.mxu0
  %v544 = vadd.f32 0.0, %v543
  %v545 = vpop.f32.mrf.mxu0
  %v546 = vpop.f32.mrf.mxu0
  %v547 = vadd.f32 0.0, %v546
  %v548 = vpop.f32.mrf.mxu0
  %549 = vmatprep.mubr.bf16.mxu0 0
  %550 = vmatmul.mubr.bf16.gmra.mxu0 %v321
  %v551 = vpop.f32.mrf.mxu0
  %v552 = vadd.f32 0.0, %v551
  %v553 = vpop.f32.mrf.mxu0
  %v554 = vpop.f32.mrf.mxu0
  %v555 = vadd.f32 0.0, %v554
  %v556 = vpop.f32.mrf.mxu0
  %557 = vmatprep.mubr.bf16.mxu0 0
  %558 = vmatmul.mubr.bf16.gmra.mxu0 %v322
  %v559 = vpop.f32.mrf.mxu0
  %v560 = vadd.f32 0.0, %v559
  %v561 = vpop.f32.mrf.mxu0
  %v562 = vpop.f32.mrf.mxu0
  %v563 = vadd.f32 0.0, %v562
  %v564 = vpop.f32.mrf.mxu0
  %565 = vmatprep.mubr.bf16.mxu0 0
  %566 = vmatmul.mubr.bf16.gmra.mxu0 %v323
  %v567 = vpop.f32.mrf.mxu0
  %v568 = vadd.f32 0.0, %v567
  %v569 = vpop.f32.mrf.mxu0
  %v570 = vpop.f32.mrf.mxu0
  %v571 = vadd.f32 0.0, %v570
  %v572 = vpop.f32.mrf.mxu0
  %573 = vmatprep.mubr.bf16.mxu0 0
  %574 = vmatmul.mubr.bf16.gmra.mxu0 %v324
  %v575 = vpop.f32.mrf.mxu0
  %v576 = vadd.f32 0.0, %v575
  %v577 = vpop.f32.mrf.mxu0
  %v578 = vpop.f32.mrf.mxu0
  %v579 = vadd.f32 0.0, %v578
  %v580 = vpop.f32.mrf.mxu0
  %581 = vmatprep.mubr.bf16.mxu0 0
  %582 = vmatmul.mubr.bf16.gmra.mxu0 %v325
  %v583 = vpop.f32.mrf.mxu0
  %v584 = vadd.f32 0.0, %v583
  %v585 = vpop.f32.mrf.mxu0
  %v586 = vpop.f32.mrf.mxu0
  %v587 = vadd.f32 0.0, %v586
  %v588 = vpop.f32.mrf.mxu0
  %589 = vmatprep.mubr.bf16.mxu0 0
  %590 = vmatmul.mubr.bf16.gmra.mxu0 %v326
  %v591 = vpop.f32.mrf.mxu0
  %v592 = vadd.f32 0.0, %v591
  %v593 = vpop.f32.mrf.mxu0
  %v594 = vpop.f32.mrf.mxu0
  %v595 = vadd.f32 0.0, %v594
  %v596 = vpop.f32.mrf.mxu0
  %597 = vmatprep.mubr.bf16.mxu0 0
  %598 = vmatmul.mubr.bf16.gmra.mxu0 %v327
  %v599 = vpop.f32.mrf.mxu0
  %v600 = vadd.f32 0.0, %v599
  %v601 = vpop.f32.mrf.mxu0
  %v602 = vpop.f32.mrf.mxu0
  %v603 = vadd.f32 0.0, %v602
  %v604 = vpop.f32.mrf.mxu0
  %605 = vmatprep.mubr.bf16.mxu0 0
  %606 = vmatmul.mubr.bf16.gmra.mxu0 %v328
  %v607 = vpop.f32.mrf.mxu0
  %v608 = vadd.f32 0.0, %v607
  %v609 = vpop.f32.mrf.mxu0
  %v610 = vpop.f32.mrf.mxu0
  %v611 = vadd.f32 0.0, %v610
  %v612 = vpop.f32.mrf.mxu0
  %613 = vmatprep.mubr.bf16.mxu0 0
  %614 = vmatmul.mubr.bf16.gmra.mxu0 %v329
  %v615 = vpop.f32.mrf.mxu0
  %v616 = vadd.f32 0.0, %v615
  %v617 = vpop.f32.mrf.mxu0
  %v618 = vpop.f32.mrf.mxu0
  %v619 = vadd.f32 0.0, %v618
  %v620 = vpop.f32.mrf.mxu0
  %621 = vmatprep.mubr.bf16.mxu0 0
  %622 = vmatmul.mubr.bf16.gmra.mxu0 %v330
  %v623 = vpop.f32.mrf.mxu0
  %v624 = vadd.f32 0.0, %v623
  %v625 = vpop.f32.mrf.mxu0
  %v626 = vpop.f32.mrf.mxu0
  %v627 = vadd.f32 0.0, %v626
  %v628 = vpop.f32.mrf.mxu0
  %629 = vmatprep.mubr.bf16.mxu0 0
  %630 = vmatmul.mubr.bf16.gmra.mxu0 %v331
  %v631 = vpop.f32.mrf.mxu0
  %v632 = vadd.f32 0.0, %v631
  %v633 = vpop.f32.mrf.mxu0
  %v634 = vpop.f32.mrf.mxu0
  %v635 = vadd.f32 0.0, %v634
  %v636 = vpop.f32.mrf.mxu0
  %637 = vmatprep.mubr.bf16.mxu0 0
  %638 = vmatmul.mubr.bf16.gmra.mxu0 %v332
  %v639 = vpop.f32.mrf.mxu0
  %v640 = vadd.f32 0.0, %v639
  %v641 = vpop.f32.mrf.mxu0
  %v642 = vpop.f32.mrf.mxu0
  %v643 = vadd.f32 0.0, %v642
  %v644 = vpop.f32.mrf.mxu0
  %645 = vmatprep.mubr.bf16.mxu0 0
  %646 = vmatmul.mubr.bf16.gmra.mxu0 %v333
  %v647 = vpop.f32.mrf.mxu0
  %v648 = vadd.f32 0.0, %v647
  %v649 = vpop.f32.mrf.mxu0
  %v650 = vpop.f32.mrf.mxu0
  %v651 = vadd.f32 0.0, %v650
  %v652 = vpop.f32.mrf.mxu0
  %653 = vmatprep.mubr.bf16.mxu0 0
  %654 = vmatmul.mubr.bf16.gmra.mxu0 %v334
  %v655 = vpop.f32.mrf.mxu0
  %v656 = vadd.f32 0.0, %v655
  %v657 = vpop.f32.mrf.mxu0
  %v658 = vpop.f32.mrf.mxu0
  %v659 = vadd.f32 0.0, %v658
  %v660 = vpop.f32.mrf.mxu0
  %661 = vmatprep.mubr.bf16.mxu0 0
  %662 = vmatmul.mubr.bf16.gmra.mxu0 %v335
  %v663 = vpop.f32.mrf.mxu0
  %v664 = vadd.f32 0.0, %v663
  %v665 = vpop.f32.mrf.mxu0
  %v666 = vpop.f32.mrf.mxu0
  %v667 = vadd.f32 0.0, %v666
  %v668 = vpop.f32.mrf.mxu0
  %669 = vmatprep.mubr.bf16.mxu0 0
  %670 = vmatmul.mubr.bf16.gmra.mxu0 %v336
  %v671 = vpop.f32.mrf.mxu0
  %v672 = vadd.f32 0.0, %v671
  %v673 = vpop.f32.mrf.mxu0
  %v674 = vpop.f32.mrf.mxu0
  %v675 = vadd.f32 0.0, %v674
  %v676 = vpop.f32.mrf.mxu0
  %677 = vmatprep.mubr.bf16.mxu0 0
  %678 = vmatmul.mubr.bf16.gmra.mxu0 %v337
  %v679 = vpop.f32.mrf.mxu0
  %v680 = vadd.f32 0.0, %v679
  %v681 = vpop.f32.mrf.mxu0
  %v682 = vpop.f32.mrf.mxu0
  %v683 = vadd.f32 0.0, %v682
  %v684 = vpop.f32.mrf.mxu0
  %685 = vmatprep.mubr.bf16.mxu0 0
  %686 = vmatmul.mubr.bf16.gmra.mxu0 %v338
  %v687 = vpop.f32.mrf.mxu0
  %v688 = vadd.f32 0.0, %v687
  %v689 = vpop.f32.mrf.mxu0
  %v690 = vpop.f32.mrf.mxu0
  %v691 = vadd.f32 0.0, %v690
  %v692 = vpop.f32.mrf.mxu0
  %693 = vmatprep.mubr.bf16.mxu0 0
  %694 = vmatmul.mubr.bf16.gmra.mxu0 %v339
  %v695 = vpop.f32.mrf.mxu0
  %v696 = vadd.f32 0.0, %v695
  %v697 = vpop.f32.mrf.mxu0
  %v698 = vpop.f32.mrf.mxu0
  %v699 = vadd.f32 0.0, %v698
  %v700 = vpop.f32.mrf.mxu0
  %701 = vmatprep.mubr.bf16.mxu0 0
  %702 = vmatmul.mubr.bf16.gmra.mxu0 %v340
  %v703 = vpop.f32.mrf.mxu0
  %v704 = vadd.f32 0.0, %v703
  %v705 = vpop.f32.mrf.mxu0
  %v706 = vpop.f32.mrf.mxu0
  %v707 = vadd.f32 0.0, %v706
  %v708 = vpop.f32.mrf.mxu0
  %709 = vdwg.mxu0
  %v774 = vunpack.c.l.b16 %v21
  %v775 = vunpack.c.l.b16 %v22
  %v776 = vunpack.c.l.b16 %v23
  %v777 = vunpack.c.l.b16 %v24
  %v778 = vunpack.c.l.b16 %v25
  %v779 = vunpack.c.l.b16 %v26
  %v780 = vunpack.c.l.b16 %v27
  %v781 = vunpack.c.l.b16 %v28
  %v782 = vunpack.c.l.b16 %v29
  %v783 = vunpack.c.l.b16 %v30
  %v784 = vunpack.c.l.b16 %v31
  %v785 = vunpack.c.l.b16 %v32
  %v786 = vunpack.c.l.b16 %v33
  %v787 = vunpack.c.l.b16 %v34
  %v788 = vunpack.c.l.b16 %v35
  %v789 = vunpack.c.l.b16 %v36
  %v790 = vunpack.c.l.b16 %v37
  %v791 = vunpack.c.l.b16 %v38
  %v792 = vunpack.c.l.b16 %v39
  %v793 = vunpack.c.l.b16 %v40
  %v794 = vunpack.c.l.b16 %v41
  %v795 = vunpack.c.l.b16 %v42
  %v796 = vunpack.c.l.b16 %v43
  %v797 = vunpack.c.l.b16 %v44
  %v798 = vunpack.c.l.b16 %v45
  %v799 = vunpack.c.l.b16 %v46
  %v800 = vunpack.c.l.b16 %v47
  %v801 = vunpack.c.l.b16 %v48
  %v802 = vunpack.c.l.b16 %v49
  %v803 = vunpack.c.l.b16 %v50
  %v804 = vunpack.c.l.b16 %v51
  %v805 = vunpack.c.l.b16 %v52
  %v806 = vunpack.c.l.b16 %v53
  %v807 = vunpack.c.l.b16 %v54
  %v808 = vunpack.c.l.b16 %v55
  %v809 = vunpack.c.l.b16 %v56
  %v810 = vunpack.c.l.b16 %v57
  %v811 = vunpack.c.l.b16 %v58
  %v812 = vunpack.c.l.b16 %v59
  %v813 = vunpack.c.l.b16 %v60
  %v814 = vunpack.c.l.b16 %v61
  %v815 = vunpack.c.l.b16 %v62
  %v816 = vunpack.c.l.b16 %v63
  %v817 = vunpack.c.l.b16 %v64
  %v818 = vunpack.c.l.b16 %v65
  %v819 = vunpack.c.l.b16 %v66
  %v820 = vunpack.c.l.b16 %v67
  %v821 = vunpack.c.l.b16 %v68
  %v822 = vunpack.c.l.b16 %v69
  %v823 = vunpack.c.l.b16 %v70
  %v824 = vunpack.c.l.b16 %v71
  %v825 = vunpack.c.l.b16 %v72
  %v826 = vunpack.c.l.b16 %v73
  %v827 = vunpack.c.l.b16 %v74
  %v828 = vunpack.c.l.b16 %v75
  %v829 = vunpack.c.l.b16 %v76
  %v830 = vunpack.c.l.b16 %v77
  %v831 = vunpack.c.l.b16 %v78
  %v832 = vunpack.c.l.b16 %v79
  %v833 = vunpack.c.l.b16 %v80
  %v834 = vunpack.c.l.b16 %v81
  %v835 = vunpack.c.l.b16 %v82
  %v836 = vunpack.c.l.b16 %v83
  %v837 = vunpack.c.l.b16 %v84
  %v838 = vpack.c.b16 %v775, %v774
  %v839 = vpack.c.b16 %v777, %v776
  %v840 = vpack.c.b16 %v779, %v778
  %v841 = vpack.c.b16 %v781, %v780
  %v842 = vpack.c.b16 %v783, %v782
  %v843 = vpack.c.b16 %v785, %v784
  %v844 = vpack.c.b16 %v787, %v786
  %v845 = vpack.c.b16 %v789, %v788
  %v846 = vpack.c.b16 %v791, %v790
  %v847 = vpack.c.b16 %v793, %v792
  %v848 = vpack.c.b16 %v795, %v794
  %v849 = vpack.c.b16 %v797, %v796
  %v850 = vpack.c.b16 %v799, %v798
  %v851 = vpack.c.b16 %v801, %v800
  %v852 = vpack.c.b16 %v803, %v802
  %v853 = vpack.c.b16 %v805, %v804
  %v854 = vpack.c.b16 %v807, %v806
  %v855 = vpack.c.b16 %v809, %v808
  %v856 = vpack.c.b16 %v811, %v810
  %v857 = vpack.c.b16 %v813, %v812
  %v858 = vpack.c.b16 %v815, %v814
  %v859 = vpack.c.b16 %v817, %v816
  %v860 = vpack.c.b16 %v819, %v818
  %v861 = vpack.c.b16 %v821, %v820
  %v862 = vpack.c.b16 %v823, %v822
  %v863 = vpack.c.b16 %v825, %v824
  %v864 = vpack.c.b16 %v827, %v826
  %v865 = vpack.c.b16 %v829, %v828
  %v866 = vpack.c.b16 %v831, %v830
  %v867 = vpack.c.b16 %v833, %v832
  %v868 = vpack.c.b16 %v835, %v834
  %v869 = vpack.c.b16 %v837, %v836
  %v918 = vunpack.c.l.b16 %v85
  %v919 = vunpack.c.l.b16 %v86
  %v920 = vunpack.c.l.b16 %v87
  %v921 = vunpack.c.l.b16 %v88
  %v922 = vunpack.c.l.b16 %v89
  %v923 = vunpack.c.l.b16 %v90
  %v924 = vunpack.c.l.b16 %v91
  %v925 = vunpack.c.l.b16 %v92
  %v926 = vunpack.c.l.b16 %v93
  %v927 = vunpack.c.l.b16 %v94
  %v928 = vunpack.c.l.b16 %v95
  %v929 = vunpack.c.l.b16 %v96
  %v930 = vunpack.c.l.b16 %v97
  %v931 = vunpack.c.l.b16 %v98
  %v932 = vunpack.c.l.b16 %v99
  %v933 = vunpack.c.l.b16 %v100
  %v934 = vpack.c.b16 %v919, %v918
  %v935 = vpack.c.b16 %v921, %v920
  %v936 = vpack.c.b16 %v923, %v922
  %v937 = vpack.c.b16 %v925, %v924
  %v938 = vpack.c.b16 %v927, %v926
  %v939 = vpack.c.b16 %v929, %v928
  %v940 = vpack.c.b16 %v931, %v930
  %v941 = vpack.c.b16 %v933, %v932
  %950 = vmatprep.subr.bf16.mxu0 0
  %951 = vmatpush1.bf16.msra.mxu0 %v941
  %952 = vmatprep.subr.bf16.mxu0 0
  %953 = vmatpush1.bf16.msra.mxu0 %v940
  %954 = vmatprep.subr.bf16.mxu0 0
  %955 = vmatpush1.bf16.msra.mxu0 %v939
  %956 = vmatprep.subr.bf16.mxu0 0
  %957 = vmatpush1.bf16.msra.mxu0 %v938
  %958 = vmatprep.subr.bf16.mxu0 0
  %959 = vmatpush1.bf16.msra.mxu0 %v937
  %960 = vmatprep.subr.bf16.mxu0 0
  %961 = vmatpush1.bf16.msra.mxu0 %v936
  %962 = vmatprep.subr.bf16.mxu0 0
  %963 = vmatpush1.bf16.msra.mxu0 %v935
  %964 = vmatprep.subr.bf16.mxu0 0
  %965 = vmatpush1.bf16.msra.mxu0 %v934
  %966 = vmatprep.subr.bf16.mxu0 0
  %967 = vmatpush2.bf16.msra.mxu0 0
  %968 = vmatprep.subr.bf16.mxu0 0
  %969 = vmatpush2.bf16.msra.mxu0 0
  %970 = vmatprep.subr.bf16.mxu0 0
  %971 = vmatpush2.bf16.msra.mxu0 0
  %972 = vmatprep.subr.bf16.mxu0 0
  %973 = vmatpush2.bf16.msra.mxu0 0
  %974 = vmatprep.subr.bf16.mxu0 0
  %975 = vmatpush2.bf16.msra.mxu0 0
  %976 = vmatprep.subr.bf16.mxu0 0
  %977 = vmatpush2.bf16.msra.mxu0 0
  %978 = vmatprep.subr.bf16.mxu0 0
  %979 = vmatpush2.bf16.msra.mxu0 0
  %980 = vmatprep.subr.bf16.mxu0 0
  %981 = vmatpush2.bf16.msra.mxu0 0
  %982 = vmatprep.mubr.bf16.mxu0 0
  %983 = vmatmul.mubr.bf16.gmra.mxu0 %v838
  %v984 = vpop.f32.mrf.mxu0
  %v985 = vadd.f32 %v456, %v984
  %v986 = vpop.f32.mrf.mxu0
  %v987 = vpop.f32.mrf.mxu0
  %v988 = vadd.f32 %v459, %v987
  %v989 = vpop.f32.mrf.mxu0
  %990 = vmatprep.mubr.bf16.mxu0 0
  %991 = vmatmul.mubr.bf16.gmra.mxu0 %v839
  %v992 = vpop.f32.mrf.mxu0
  %v993 = vadd.f32 %v464, %v992
  %v994 = vpop.f32.mrf.mxu0
  %v995 = vpop.f32.mrf.mxu0
  %v996 = vadd.f32 %v467, %v995
  %v997 = vpop.f32.mrf.mxu0
  %998 = vmatprep.mubr.bf16.mxu0 0
  %999 = vmatmul.mubr.bf16.gmra.mxu0 %v840
  %v1000 = vpop.f32.mrf.mxu0
  %v1001 = vadd.f32 %v472, %v1000
  %v1002 = vpop.f32.mrf.mxu0
  %v1003 = vpop.f32.mrf.mxu0
  %v1004 = vadd.f32 %v475, %v1003
  %v1005 = vpop.f32.mrf.mxu0
  %1006 = vmatprep.mubr.bf16.mxu0 0
  %1007 = vmatmul.mubr.bf16.gmra.mxu0 %v841
  %v1008 = vpop.f32.mrf.mxu0
  %v1009 = vadd.f32 %v480, %v1008
  %v1010 = vpop.f32.mrf.mxu0
  %v1011 = vpop.f32.mrf.mxu0
  %v1012 = vadd.f32 %v483, %v1011
  %v1013 = vpop.f32.mrf.mxu0
  %1014 = vmatprep.mubr.bf16.mxu0 0
  %1015 = vmatmul.mubr.bf16.gmra.mxu0 %v842
  %v1016 = vpop.f32.mrf.mxu0
  %v1017 = vadd.f32 %v488, %v1016
  %v1018 = vpop.f32.mrf.mxu0
  %v1019 = vpop.f32.mrf.mxu0
  %v1020 = vadd.f32 %v491, %v1019
  %v1021 = vpop.f32.mrf.mxu0
  %1022 = vmatprep.mubr.bf16.mxu0 0
  %1023 = vmatmul.mubr.bf16.gmra.mxu0 %v843
  %v1024 = vpop.f32.mrf.mxu0
  %v1025 = vadd.f32 %v496, %v1024
  %v1026 = vpop.f32.mrf.mxu0
  %v1027 = vpop.f32.mrf.mxu0
  %v1028 = vadd.f32 %v499, %v1027
  %v1029 = vpop.f32.mrf.mxu0
  %1030 = vmatprep.mubr.bf16.mxu0 0
  %1031 = vmatmul.mubr.bf16.gmra.mxu0 %v844
  %v1032 = vpop.f32.mrf.mxu0
  %v1033 = vadd.f32 %v504, %v1032
  %v1034 = vpop.f32.mrf.mxu0
  %v1035 = vpop.f32.mrf.mxu0
  %v1036 = vadd.f32 %v507, %v1035
  %v1037 = vpop.f32.mrf.mxu0
  %1038 = vmatprep.mubr.bf16.mxu0 0
  %1039 = vmatmul.mubr.bf16.gmra.mxu0 %v845
  %v1040 = vpop.f32.mrf.mxu0
  %v1041 = vadd.f32 %v512, %v1040
  %v1042 = vpop.f32.mrf.mxu0
  %v1043 = vpop.f32.mrf.mxu0
  %v1044 = vadd.f32 %v515, %v1043
  %v1045 = vpop.f32.mrf.mxu0
  %1046 = vmatprep.mubr.bf16.mxu0 0
  %1047 = vmatmul.mubr.bf16.gmra.mxu0 %v846
  %v1048 = vpop.f32.mrf.mxu0
  %v1049 = vadd.f32 %v520, %v1048
  %v1050 = vpop.f32.mrf.mxu0
  %v1051 = vpop.f32.mrf.mxu0
  %v1052 = vadd.f32 %v523, %v1051
  %v1053 = vpop.f32.mrf.mxu0
  %1054 = vmatprep.mubr.bf16.mxu0 0
  %1055 = vmatmul.mubr.bf16.gmra.mxu0 %v847
  %v1056 = vpop.f32.mrf.mxu0
  %v1057 = vadd.f32 %v528, %v1056
  %v1058 = vpop.f32.mrf.mxu0
  %v1059 = vpop.f32.mrf.mxu0
  %v1060 = vadd.f32 %v531, %v1059
  %v1061 = vpop.f32.mrf.mxu0
  %1062 = vmatprep.mubr.bf16.mxu0 0
  %1063 = vmatmul.mubr.bf16.gmra.mxu0 %v848
  %v1064 = vpop.f32.mrf.mxu0
  %v1065 = vadd.f32 %v536, %v1064
  %v1066 = vpop.f32.mrf.mxu0
  %v1067 = vpop.f32.mrf.mxu0
  %v1068 = vadd.f32 %v539, %v1067
  %v1069 = vpop.f32.mrf.mxu0
  %1070 = vmatprep.mubr.bf16.mxu0 0
  %1071 = vmatmul.mubr.bf16.gmra.mxu0 %v849
  %v1072 = vpop.f32.mrf.mxu0
  %v1073 = vadd.f32 %v544, %v1072
  %v1074 = vpop.f32.mrf.mxu0
  %v1075 = vpop.f32.mrf.mxu0
  %v1076 = vadd.f32 %v547, %v1075
  %v1077 = vpop.f32.mrf.mxu0
  %1078 = vmatprep.mubr.bf16.mxu0 0
  %1079 = vmatmul.mubr.bf16.gmra.mxu0 %v850
  %v1080 = vpop.f32.mrf.mxu0
  %v1081 = vadd.f32 %v552, %v1080
  %v1082 = vpop.f32.mrf.mxu0
  %v1083 = vpop.f32.mrf.mxu0
  %v1084 = vadd.f32 %v555, %v1083
  %v1085 = vpop.f32.mrf.mxu0
  %1086 = vmatprep.mubr.bf16.mxu0 0
  %1087 = vmatmul.mubr.bf16.gmra.mxu0 %v851
  %v1088 = vpop.f32.mrf.mxu0
  %v1089 = vadd.f32 %v560, %v1088
  %v1090 = vpop.f32.mrf.mxu0
  %v1091 = vpop.f32.mrf.mxu0
  %v1092 = vadd.f32 %v563, %v1091
  %v1093 = vpop.f32.mrf.mxu0
  %1094 = vmatprep.mubr.bf16.mxu0 0
  %1095 = vmatmul.mubr.bf16.gmra.mxu0 %v852
  %v1096 = vpop.f32.mrf.mxu0
  %v1097 = vadd.f32 %v568, %v1096
  %v1098 = vpop.f32.mrf.mxu0
  %v1099 = vpop.f32.mrf.mxu0
  %v1100 = vadd.f32 %v571, %v1099
  %v1101 = vpop.f32.mrf.mxu0
  %1102 = vmatprep.mubr.bf16.mxu0 0
  %1103 = vmatmul.mubr.bf16.gmra.mxu0 %v853
  %v1104 = vpop.f32.mrf.mxu0
  %v1105 = vadd.f32 %v576, %v1104
  %v1106 = vpop.f32.mrf.mxu0
  %v1107 = vpop.f32.mrf.mxu0
  %v1108 = vadd.f32 %v579, %v1107
  %v1109 = vpop.f32.mrf.mxu0
  %1110 = vmatprep.mubr.bf16.mxu0 0
  %1111 = vmatmul.mubr.bf16.gmra.mxu0 %v854
  %v1112 = vpop.f32.mrf.mxu0
  %v1113 = vadd.f32 %v584, %v1112
  %v1114 = vpop.f32.mrf.mxu0
  %v1115 = vpop.f32.mrf.mxu0
  %v1116 = vadd.f32 %v587, %v1115
  %v1117 = vpop.f32.mrf.mxu0
  %1118 = vmatprep.mubr.bf16.mxu0 0
  %1119 = vmatmul.mubr.bf16.gmra.mxu0 %v855
  %v1120 = vpop.f32.mrf.mxu0
  %v1121 = vadd.f32 %v592, %v1120
  %v1122 = vpop.f32.mrf.mxu0
  %v1123 = vpop.f32.mrf.mxu0
  %v1124 = vadd.f32 %v595, %v1123
  %v1125 = vpop.f32.mrf.mxu0
  %1126 = vmatprep.mubr.bf16.mxu0 0
  %1127 = vmatmul.mubr.bf16.gmra.mxu0 %v856
  %v1128 = vpop.f32.mrf.mxu0
  %v1129 = vadd.f32 %v600, %v1128
  %v1130 = vpop.f32.mrf.mxu0
  %v1131 = vpop.f32.mrf.mxu0
  %v1132 = vadd.f32 %v603, %v1131
  %v1133 = vpop.f32.mrf.mxu0
  %1134 = vmatprep.mubr.bf16.mxu0 0
  %1135 = vmatmul.mubr.bf16.gmra.mxu0 %v857
  %v1136 = vpop.f32.mrf.mxu0
  %v1137 = vadd.f32 %v608, %v1136
  %v1138 = vpop.f32.mrf.mxu0
  %v1139 = vpop.f32.mrf.mxu0
  %v1140 = vadd.f32 %v611, %v1139
  %v1141 = vpop.f32.mrf.mxu0
  %1142 = vmatprep.mubr.bf16.mxu0 0
  %1143 = vmatmul.mubr.bf16.gmra.mxu0 %v858
  %v1144 = vpop.f32.mrf.mxu0
  %v1145 = vadd.f32 %v616, %v1144
  %v1146 = vpop.f32.mrf.mxu0
  %v1147 = vpop.f32.mrf.mxu0
  %v1148 = vadd.f32 %v619, %v1147
  %v1149 = vpop.f32.mrf.mxu0
  %1150 = vmatprep.mubr.bf16.mxu0 0
  %1151 = vmatmul.mubr.bf16.gmra.mxu0 %v859
  %v1152 = vpop.f32.mrf.mxu0
  %v1153 = vadd.f32 %v624, %v1152
  %v1154 = vpop.f32.mrf.mxu0
  %v1155 = vpop.f32.mrf.mxu0
  %v1156 = vadd.f32 %v627, %v1155
  %v1157 = vpop.f32.mrf.mxu0
  %1158 = vmatprep.mubr.bf16.mxu0 0
  %1159 = vmatmul.mubr.bf16.gmra.mxu0 %v860
  %v1160 = vpop.f32.mrf.mxu0
  %v1161 = vadd.f32 %v632, %v1160
  %v1162 = vpop.f32.mrf.mxu0
  %v1163 = vpop.f32.mrf.mxu0
  %v1164 = vadd.f32 %v635, %v1163
  %v1165 = vpop.f32.mrf.mxu0
  %1166 = vmatprep.mubr.bf16.mxu0 0
  %1167 = vmatmul.mubr.bf16.gmra.mxu0 %v861
  %v1168 = vpop.f32.mrf.mxu0
  %v1169 = vadd.f32 %v640, %v1168
  %v1170 = vpop.f32.mrf.mxu0
  %v1171 = vpop.f32.mrf.mxu0
  %v1172 = vadd.f32 %v643, %v1171
  %v1173 = vpop.f32.mrf.mxu0
  %1174 = vmatprep.mubr.bf16.mxu0 0
  %1175 = vmatmul.mubr.bf16.gmra.mxu0 %v862
  %v1176 = vpop.f32.mrf.mxu0
  %v1177 = vadd.f32 %v648, %v1176
  %v1178 = vpop.f32.mrf.mxu0
  %v1179 = vpop.f32.mrf.mxu0
  %v1180 = vadd.f32 %v651, %v1179
  %v1181 = vpop.f32.mrf.mxu0
  %1182 = vmatprep.mubr.bf16.mxu0 0
  %1183 = vmatmul.mubr.bf16.gmra.mxu0 %v863
  %v1184 = vpop.f32.mrf.mxu0
  %v1185 = vadd.f32 %v656, %v1184
  %v1186 = vpop.f32.mrf.mxu0
  %v1187 = vpop.f32.mrf.mxu0
  %v1188 = vadd.f32 %v659, %v1187
  %v1189 = vpop.f32.mrf.mxu0
  %1190 = vmatprep.mubr.bf16.mxu0 0
  %1191 = vmatmul.mubr.bf16.gmra.mxu0 %v864
  %v1192 = vpop.f32.mrf.mxu0
  %v1193 = vadd.f32 %v664, %v1192
  %v1194 = vpop.f32.mrf.mxu0
  %v1195 = vpop.f32.mrf.mxu0
  %v1196 = vadd.f32 %v667, %v1195
  %v1197 = vpop.f32.mrf.mxu0
  %1198 = vmatprep.mubr.bf16.mxu0 0
  %1199 = vmatmul.mubr.bf16.gmra.mxu0 %v865
  %v1200 = vpop.f32.mrf.mxu0
  %v1201 = vadd.f32 %v672, %v1200
  %v1202 = vpop.f32.mrf.mxu0
  %v1203 = vpop.f32.mrf.mxu0
  %v1204 = vadd.f32 %v675, %v1203
  %v1205 = vpop.f32.mrf.mxu0
  %1206 = vmatprep.mubr.bf16.mxu0 0
  %1207 = vmatmul.mubr.bf16.gmra.mxu0 %v866
  %v1208 = vpop.f32.mrf.mxu0
  %v1209 = vadd.f32 %v680, %v1208
  %v1210 = vpop.f32.mrf.mxu0
  %v1211 = vpop.f32.mrf.mxu0
  %v1212 = vadd.f32 %v683, %v1211
  %v1213 = vpop.f32.mrf.mxu0
  %1214 = vmatprep.mubr.bf16.mxu0 0
  %1215 = vmatmul.mubr.bf16.gmra.mxu0 %v867
  %v1216 = vpop.f32.mrf.mxu0
  %v1217 = vadd.f32 %v688, %v1216
  %v1218 = vpop.f32.mrf.mxu0
  %v1219 = vpop.f32.mrf.mxu0
  %v1220 = vadd.f32 %v691, %v1219
  %v1221 = vpop.f32.mrf.mxu0
  %1222 = vmatprep.mubr.bf16.mxu0 0
  %1223 = vmatmul.mubr.bf16.gmra.mxu0 %v868
  %v1224 = vpop.f32.mrf.mxu0
  %v1225 = vadd.f32 %v696, %v1224
  %v1226 = vpop.f32.mrf.mxu0
  %v1227 = vpop.f32.mrf.mxu0
  %v1228 = vadd.f32 %v699, %v1227
  %v1229 = vpop.f32.mrf.mxu0
  %1230 = vmatprep.mubr.bf16.mxu0 0
  %1231 = vmatmul.mubr.bf16.gmra.mxu0 %v869
  %v1232 = vpop.f32.mrf.mxu0
  %v1233 = vadd.f32 %v704, %v1232
  %v1234 = vpop.f32.mrf.mxu0
  %v1235 = vpop.f32.mrf.mxu0
  %v1236 = vadd.f32 %v707, %v1235
  %v1237 = vpop.f32.mrf.mxu0
  %1238 = vdwg.mxu0
  %v1239 = vld [vmem:[%s4] sm:$0x1]
  %v1241 = vlaneseq
  %v1242 = vshrl.u32 %v1241, 7
  %v1243 = vsub.s32 0, %v1242
  %v1244 = vrot.slane %v1239, %v1243
  %v1246 = vadd.f32 %v985, %v1244
  %v1247 = vadd.f32 %v988, %v1244
  %v1248 = vadd.f32 %v993, %v1244
  %v1249 = vadd.f32 %v996, %v1244
  %v1250 = vadd.f32 %v1001, %v1244
  %v1251 = vadd.f32 %v1004, %v1244
  %v1252 = vadd.f32 %v1009, %v1244
  %v1253 = vadd.f32 %v1012, %v1244
  %v1254 = vadd.f32 %v1017, %v1244
  %v1255 = vadd.f32 %v1020, %v1244
  %v1256 = vadd.f32 %v1025, %v1244
  %v1257 = vadd.f32 %v1028, %v1244
  %v1258 = vadd.f32 %v1033, %v1244
  %v1259 = vadd.f32 %v1036, %v1244
  %v1260 = vadd.f32 %v1041, %v1244
  %v1261 = vadd.f32 %v1044, %v1244
  %v1262 = vadd.f32 %v1049, %v1244
  %v1263 = vadd.f32 %v1052, %v1244
  %v1264 = vadd.f32 %v1057, %v1244
  %v1265 = vadd.f32 %v1060, %v1244
  %v1266 = vadd.f32 %v1065, %v1244
  %v1267 = vadd.f32 %v1068, %v1244
  %v1268 = vadd.f32 %v1073, %v1244
  %v1269 = vadd.f32 %v1076, %v1244
  %v1270 = vadd.f32 %v1081, %v1244
  %v1271 = vadd.f32 %v1084, %v1244
  %v1272 = vadd.f32 %v1089, %v1244
  %v1273 = vadd.f32 %v1092, %v1244
  %v1274 = vadd.f32 %v1097, %v1244
  %v1275 = vadd.f32 %v1100, %v1244
  %v1276 = vadd.f32 %v1105, %v1244
  %v1277 = vadd.f32 %v1108, %v1244
  %v1278 = vadd.f32 %v1113, %v1244
  %v1279 = vadd.f32 %v1116, %v1244
  %v1280 = vadd.f32 %v1121, %v1244
  %v1281 = vadd.f32 %v1124, %v1244
  %v1282 = vadd.f32 %v1129, %v1244
  %v1283 = vadd.f32 %v1132, %v1244
  %v1284 = vadd.f32 %v1137, %v1244
  %v1285 = vadd.f32 %v1140, %v1244
  %v1286 = vadd.f32 %v1145, %v1244
  %v1287 = vadd.f32 %v1148, %v1244
  %v1288 = vadd.f32 %v1153, %v1244
  %v1289 = vadd.f32 %v1156, %v1244
  %v1290 = vadd.f32 %v1161, %v1244
  %v1291 = vadd.f32 %v1164, %v1244
  %v1292 = vadd.f32 %v1169, %v1244
  %v1293 = vadd.f32 %v1172, %v1244
  %v1294 = vadd.f32 %v1177, %v1244
  %v1295 = vadd.f32 %v1180, %v1244
  %v1296 = vadd.f32 %v1185, %v1244
  %v1297 = vadd.f32 %v1188, %v1244
  %v1298 = vadd.f32 %v1193, %v1244
  %v1299 = vadd.f32 %v1196, %v1244
  %v1300 = vadd.f32 %v1201, %v1244
  %v1301 = vadd.f32 %v1204, %v1244
  %v1302 = vadd.f32 %v1209, %v1244
  %v1303 = vadd.f32 %v1212, %v1244
  %v1304 = vadd.f32 %v1217, %v1244
  %v1305 = vadd.f32 %v1220, %v1244
  %v1306 = vadd.f32 %v1225, %v1244
  %v1307 = vadd.f32 %v1228, %v1244
  %v1308 = vadd.f32 %v1233, %v1244
  %v1309 = vadd.f32 %v1236, %v1244
  %1310 = vst [vmem:[%s5] sm:$0xff] %v1246
  %1311 = vst [vmem:[%s5 + $0x8] sm:$0xff] %v1247
  %1312 = vst [vmem:[%s5 + $0x10] sm:$0xff] %v1248
  %1313 = vst [vmem:[%s5 + $0x18] sm:$0xff] %v1249
  %1314 = vst [vmem:[%s5 + $0x20] sm:$0xff] %v1250
  %1315 = vst [vmem:[%s5 + $0x28] sm:$0xff] %v1251
  %1316 = vst [vmem:[%s5 + $0x30] sm:$0xff] %v1252
  %1317 = vst [vmem:[%s5 + $0x38] sm:$0xff] %v1253
  %1318 = vst [vmem:[%s5 + $0x40] sm:$0xff] %v1254
  %1319 = vst [vmem:[%s5 + $0x48] sm:$0xff] %v1255
  %1320 = vst [vmem:[%s5 + $0x50] sm:$0xff] %v1256
  %1321 = vst [vmem:[%s5 + $0x58] sm:$0xff] %v1257
  %1322 = vst [vmem:[%s5 + $0x60] sm:$0xff] %v1258
  %1323 = vst [vmem:[%s5 + $0x68] sm:$0xff] %v1259
  %1324 = vst [vmem:[%s5 + $0x70] sm:$0xff] %v1260
  %1325 = vst [vmem:[%s5 + $0x78] sm:$0xff] %v1261
  %1326 = vst [vmem:[%s5 + $0x80] sm:$0xff] %v1262
  %1327 = vst [vmem:[%s5 + $0x88] sm:$0xff] %v1263
  %1328 = vst [vmem:[%s5 + $0x90] sm:$0xff] %v1264
  %1329 = vst [vmem:[%s5 + $0x98] sm:$0xff] %v1265
  %1330 = vst [vmem:[%s5 + $0xa0] sm:$0xff] %v1266
  %1331 = vst [vmem:[%s5 + $0xa8] sm:$0xff] %v1267
  %1332 = vst [vmem:[%s5 + $0xb0] sm:$0xff] %v1268
  %1333 = vst [vmem:[%s5 + $0xb8] sm:$0xff] %v1269
  %1334 = vst [vmem:[%s5 + $0xc0] sm:$0xff] %v1270
  %1335 = vst [vmem:[%s5 + $0xc8] sm:$0xff] %v1271
  %1336 = vst [vmem:[%s5 + $0xd0] sm:$0xff] %v1272
  %1337 = vst [vmem:[%s5 + $0xd8] sm:$0xff] %v1273
  %1338 = vst [vmem:[%s5 + $0xe0] sm:$0xff] %v1274
  %1339 = vst [vmem:[%s5 + $0xe8] sm:$0xff] %v1275
  %1340 = vst [vmem:[%s5 + $0xf0] sm:$0xff] %v1276
  %1341 = vst [vmem:[%s5 + $0xf8] sm:$0xff] %v1277
  %1342 = vst [vmem:[%s5 + $0x100] sm:$0xff] %v1278
  %1343 = vst [vmem:[%s5 + $0x108] sm:$0xff] %v1279
  %1344 = vst [vmem:[%s5 + $0x110] sm:$0xff] %v1280
  %1345 = vst [vmem:[%s5 + $0x118] sm:$0xff] %v1281
  %1346 = vst [vmem:[%s5 + $0x120] sm:$0xff] %v1282
  %1347 = vst [vmem:[%s5 + $0x128] sm:$0xff] %v1283
  %1348 = vst [vmem:[%s5 + $0x130] sm:$0xff] %v1284
  %1349 = vst [vmem:[%s5 + $0x138] sm:$0xff] %v1285
  %1350 = vst [vmem:[%s5 + $0x140] sm:$0xff] %v1286
  %1351 = vst [vmem:[%s5 + $0x148] sm:$0xff] %v1287
  %1352 = vst [vmem:[%s5 + $0x150] sm:$0xff] %v1288
  %1353 = vst [vmem:[%s5 + $0x158] sm:$0xff] %v1289
  %1354 = vst [vmem:[%s5 + $0x160] sm:$0xff] %v1290
  %1355 = vst [vmem:[%s5 + $0x168] sm:$0xff] %v1291
  %1356 = vst [vmem:[%s5 + $0x170] sm:$0xff] %v1292
  %1357 = vst [vmem:[%s5 + $0x178] sm:$0xff] %v1293
  %1358 = vst [vmem:[%s5 + $0x180] sm:$0xff] %v1294
  %1359 = vst [vmem:[%s5 + $0x188] sm:$0xff] %v1295
  %1360 = vst [vmem:[%s5 + $0x190] sm:$0xff] %v1296
  %1361 = vst [vmem:[%s5 + $0x198] sm:$0xff] %v1297
  %1362 = vst [vmem:[%s5 + $0x1a0] sm:$0xff] %v1298
  %1363 = vst [vmem:[%s5 + $0x1a8] sm:$0xff] %v1299
  %1364 = vst [vmem:[%s5 + $0x1b0] sm:$0xff] %v1300
  %1365 = vst [vmem:[%s5 + $0x1b8] sm:$0xff] %v1301
  %1366 = vst [vmem:[%s5 + $0x1c0] sm:$0xff] %v1302
  %1367 = vst [vmem:[%s5 + $0x1c8] sm:$0xff] %v1303
  %1368 = vst [vmem:[%s5 + $0x1d0] sm:$0xff] %v1304
  %1369 = vst [vmem:[%s5 + $0x1d8] sm:$0xff] %v1305
  %1370 = vst [vmem:[%s5 + $0x1e0] sm:$0xff] %v1306
  %1371 = vst [vmem:[%s5 + $0x1e8] sm:$0xff] %v1307
  %1372 = vst [vmem:[%s5 + $0x1f0] sm:$0xff] %v1308
  %1373 = vst [vmem:[%s5 + $0x1f8] sm:$0xff] %v1309
  // Predicated region
  $region22: #{_cconv2d_forward.1} parent=0 // pred_check
    _
  $region23: #{_cconv2d_forward.1} parent=0 // pred_check_branch
    %1375 = sbr.rel (0) target = $region25
  $region24: #{_cconv2d_forward.1} parent=0 // pred_region
    _
  $region25: #{_cconv2d_forward.1} parent=0 // pred_fallthru
    _
  // Predicated region
  $region26: #{_cconv2d_forward.1} parent=0 // pred_check
    _
  $region27: #{_cconv2d_forward.1} parent=0 // pred_check_branch
    %1377 = sbr.rel (0) target = $region29
  $region28: #{_cconv2d_forward.1} parent=0 // pred_region
    _
  $region29: #{_cconv2d_forward.1} parent=0 // pred_fallthru
    _

</llo_original>
